<compile_context>
chip_gen: v6e
topology: v6e:2x2x1
jax: 0.10.0
libtpu: 0.0.40
codegen_flags: <defaults>
</compile_context>

<pallas_src>
import functools

import jax
import jax.numpy as jnp
from jax.experimental import pallas as pl
from jax.experimental.pallas import tpu as pltpu


def _round_up(x, m):
    return ((x + m - 1) // m) * m


def _device_kind():
    try:
        return jax.devices()[0].device_kind.lower()
    except Exception:
        return ""


_KIND = _device_kind()
_IS_V7X = "v7" in _KIND


def _pick_s_tile(s, b):
    """Token-tile size: a multiple of 128 (ragged last tile allowed) or the full
    extent S for small maps.  Never requires a wrapper-side padding copy."""
    big = 1024 if _IS_V7X else 512
    if s >= big:
        return big
    if s % 128 != 0:
        return s                      # single full-extent tile, no garbage lanes
    # S is a multiple of 128 but smaller than `big`.
    if _IS_V7X and b == 1 and s >= 256 and (s // 2) % 128 == 0:
        return s // 2                 # give both v7x TensorCores a grid cell
    return s


def _classifier_kernel(x_ref, wt_ref, b_ref, logits_ref, denom_ref):
    # x_ref:      (C, TS)    one (batch, token-tile) of the feature map, native dtype
    # wt_ref:     (NCp, C)   transposed classifier weight (pad rows are zero)
    # b_ref:      (NCp, 1)   bias column; pad rows = -1e30 -> softmax weight exactly 0
    # logits_ref: (NCp, TS)  f32 logits, token axis lane-dense
    # denom_ref:  (1, TS)    f32 softmax denominator (= 1 / max-softmax-prob)
    logits = jnp.dot(wt_ref[...], x_ref[...],
                     preferred_element_type=jnp.float32) + b_ref[...]
    # Store before reducing: bounds the live range of the big tile (v5e vregs).
    logits_ref[...] = logits
    lg = logits_ref[...]
    m = jnp.max(lg, axis=0, keepdims=True)                             # [1, TS]
    denom_ref[...] = jnp.sum(jnp.exp(lg - m), axis=0, keepdims=True)   # pad rows add 0


@functools.partial(jax.jit, static_argnames=("num_select", "num_classes", "ts"))
def _forward_layer(x_cs, w_t, b_col, *, num_select, num_classes, ts):
    """x_cs: [B, C, S] channel-major features (native dtype).
    Returns (selection [B, ns, C], logits [B, S, NC] f32,
             select_logits [B, ns, NC] f32, drop_logits [B, S-ns, NC] f32)."""
    B, C, S = x_cs.shape
    nc_pad = w_t.shape[0]

    # Classifier weight is tiny: cast IT to the feature dtype (casting the big
    # feature map in the wrapper would add a full un-fused HBM pass).
    w = w_t.astype(x_cs.dtype)

    grid = (B, pl.cdiv(S, ts))

    # Rough double-buffered per-step VMEM so large C / ts never trips the
    # scoped default (16 MiB on v5e); capped well under v7x's 64 MiB physical.
    est = 2 * (C * ts * x_cs.dtype.itemsize
               + nc_pad * C * w.dtype.itemsize
               + nc_pad * ts * 4
               + ts * 4)
    vmem_limit = int(min(max(2 * est, 16 << 20), 64 << 20))

    logits_cm, denom = pl.pallas_call(
        _classifier_kernel,
        out_shape=(
            jax.ShapeDtypeStruct((B, nc_pad, S), jnp.float32),
            jax.ShapeDtypeStruct((B, 1, S), jnp.float32),
        ),
        grid_spec=pltpu.PrefetchScalarGridSpec(
            num_scalar_prefetch=0,
            grid=grid,
            in_specs=[
                pl.BlockSpec((pl.Squeezed(), C, ts), lambda b, s: (b, 0, s)),
                # Weight/bias are grid-invariant (constant index_map => no
                # re-DMA).  pl.Buffered(1) would halve their VMEM footprint;
                # left off for lowering safety.
                pl.BlockSpec((nc_pad, C), lambda b, s: (0, 0)),
                pl.BlockSpec((nc_pad, 1), lambda b, s: (0, 0)),
            ],
            out_specs=(
                pl.BlockSpec((pl.Squeezed(), nc_pad, ts), lambda b, s: (b, 0, s)),
                pl.BlockSpec((pl.Squeezed(), 1, ts), lambda b, s: (b, 0, s)),
            ),
        ),
        compiler_params=pltpu.CompilerParams(
            dimension_semantics=("parallel", "parallel"),
            vmem_limit_bytes=vmem_limit),
    )(x_cs, w, b_col)

    # ---- fused post-processing (same jit as the pallas_call) ----
    # max-softmax prob == 1/denom  =>  descending score == ascending denom.
    ranks = jnp.argsort(denom[:, 0, :], axis=-1)                         # [B, S]

    # Small logits array back to the module's [B, S, NC] layout.
    logits_bsn = jnp.transpose(logits_cm[:, :num_classes, :], (0, 2, 1))

    # One gather with the full permutation; slice select/drop out of it.
    perm_logits = jnp.take_along_axis(logits_bsn, ranks[:, :, None], axis=1)
    sel_logits = perm_logits[:, :num_select]
    drop_logits = perm_logits[:, num_select:]

    # Gather selected tokens in channel-major form; transpose only the result.
    sel_x = jnp.take_along_axis(x_cs, ranks[:, None, :num_select], axis=2)
    sel_x = jnp.transpose(sel_x, (0, 2, 1))                              # [B, ns, C]
    return sel_x, logits_bsn, sel_logits, drop_logits


class WeaklySelectorPallas:
    """JAX/Pallas re-implementation of fgvclib WeaklySelector (fpn_size=None path)."""

    def __init__(self, inputs, num_classes, num_select, fpn_size=None, key=None):
        self.num_select = num_select
        self.fpn_size = fpn_size
        self.num_classes = num_classes
        self.params = {}    # reference layout: (W [C, NC] f32, b [NC] f32)
        self.packed = {}    # kernel layout:    (W_t [NC_pad, C] f32, b_col [NC_pad, 1] f32)
        self.last_logits = None
        if key is None:
            key = jax.random.PRNGKey(0)
        if self.fpn_size is None:
            nc_pad = max(8, _round_up(num_classes, 8))   # sublane-aligned, not 128
            for name in inputs:
                fs = inputs[name].shape
                if len(fs) == 3:       # [B, S, C]
                    in_size = fs[2]
                elif len(fs) == 4:     # [B, C, H, W]
                    in_size = fs[1]
                else:
                    raise ValueError(f"bad feature rank for {name}")
                key, kw, kb = jax.random.split(key, 3)
                # mimics nn.Linear uniform(-1/sqrt(in), 1/sqrt(in)) init
                bound = 1.0 / (float(in_size) ** 0.5)
                w = jax.random.uniform(kw, (in_size, num_classes), jnp.float32,
                                       minval=-bound, maxval=bound)
                b = jax.random.uniform(kb, (num_classes,), jnp.float32,
                                       minval=-bound, maxval=bound)
                self.params[name] = (w, b)
                w_t = jnp.zeros((nc_pad, in_size), jnp.float32).at[:num_classes].set(w.T)
                b_col = jnp.full((nc_pad, 1), -1e30, jnp.float32).at[
                    :num_classes, 0].set(b)
                self.packed[name] = (w_t, b_col)

    def __call__(self, x, logits=None):
        if self.fpn_size is None:
            logits = {}
        self.last_logits = logits
        selections = {}
        i = 0
        for name in list(x.keys()):
            xn = x[name]
            if xn.ndim == 4:
                B, C, H, W = xn.shape
                x_cs = xn.reshape(B, C, H * W)          # [B, C, S]; reshape only
            else:                                       # [B, S, C] input
                x_cs = jnp.transpose(xn, (0, 2, 1))     # [B, C, S]
            B, C, S = x_cs.shape
            # NOTE: unlike the PyTorch module we do not rewrite the caller's x
            # dict in place; selections/logits semantics are unchanged and the
            # full-feature-map HBM transpose is avoided.
            num_select = self.num_select[i][name]
            i += 1

            if self.fpn_size is None:
                w_t, b_col = self.packed[name]
                ts = _pick_s_tile(S, B)
                sel_x, logits_bsn, sel_lg, drop_lg = _forward_layer(
                    x_cs, w_t, b_col, num_select=num_select,
                    num_classes=self.num_classes, ts=ts)
                logits[name] = logits_bsn
            else:
                # TODO(synk): fpn_size path (externally supplied logits) stays plain JAX.
                lg = logits[name]                                          # [B, S, NC]
                scores = jnp.max(jax.nn.softmax(lg, axis=-1), axis=-1)
                ranks = jnp.argsort(-scores, axis=-1)
                perm = jnp.take_along_axis(lg, ranks[:, :, None], axis=1)
                sel_lg, drop_lg = perm[:, :num_select], perm[:, num_select:]
                sel_x = jnp.transpose(
                    jnp.take_along_axis(x_cs, ranks[:, None, :num_select], axis=2),
                    (0, 2, 1))

            selections[name] = sel_x
            logits["select_" + name] = sel_lg
            logits["drop_" + name] = drop_lg
        return selections


if __name__ == "__main__":
    key = jax.random.PRNGKey(0)
    k1, k2, kp = jax.random.split(key, 3)

    # Small deterministic example inputs (NCHW, like the PyTorch module expects).
    B, C_in = 2, 32
    x = {
        "layer3": jax.random.normal(k1, (B, C_in, 4, 4), jnp.float32),  # S = 16
        "layer4": jax.random.normal(k2, (B, C_in, 2, 2), jnp.float32),  # S = 4
    }
    num_classes = 8
    num_select = [{"layer3": 4}, {"layer4": 2}]
    ns_map = {"layer3": 4, "layer4": 2}

    selector = WeaklySelectorPallas(x, num_classes, num_select, fpn_size=None, key=kp)
    selections = jax.block_until_ready(selector(dict(x)))

    assert selections["layer3"].shape == (B, 4, C_in)
    assert selections["layer4"].shape == (B, 2, C_in)

    # Cross-check the Pallas hot path against a pure-JAX reference.
    for name in x:
        xn = x[name]
        Bn, Cn, H, W = xn.shape
        S = H * W
        xf = jnp.transpose(xn.reshape(Bn, Cn, S), (0, 2, 1))            # [B, S, C]
        w, b = selector.params[name]
        ref_logits = jnp.einsum("bsc,cn->bsn", xf, w,
                                preferred_element_type=jnp.float32) + b
        ref_scores = jnp.max(jax.nn.softmax(ref_logits, axis=-1), axis=-1)
        ref_ranks = jnp.argsort(-ref_scores, axis=-1)
        ns = ns_map[name]
        ref_sel = jnp.take_along_axis(xf, ref_ranks[:, :ns, None], axis=1)
        ref_sel_lg = jnp.take_along_axis(ref_logits, ref_ranks[:, :ns, None], axis=1)

        got_logits = selector.last_logits[name]
        assert got_logits.shape == (Bn, S, num_classes), name
        assert jnp.allclose(ref_logits, got_logits, atol=1e-4, rtol=1e-4), name
        assert jnp.allclose(ref_sel, selections[name], atol=1e-5, rtol=1e-5), name
        assert jnp.allclose(ref_sel_lg, selector.last_logits["select_" + name],
                            atol=1e-4, rtol=1e-4), name

    # bf16-feature smoke test (the small weight is cast to the feature dtype at
    # call time; the big feature map is never re-cast/re-written in the wrapper).
    x_bf16 = {k: v.astype(jnp.bfloat16) for k, v in x.items()}
    sel_bf16 = jax.block_until_ready(selector(dict(x_bf16)))
    assert sel_bf16["layer3"].shape == (B, 4, C_in)
    assert sel_bf16["layer4"].shape == (B, 2, C_in)
    assert all(bool(jnp.all(jnp.isfinite(v.astype(jnp.float32))))
               for v in sel_bf16.values())

    print("KERNEL_OK")
</pallas_src>

<mosaic_0001>
module attributes {stable_mosaic.version = 11 : i64} {
  func.func @_classifier_kernel(%arg0: i32, %arg1: i32, %arg2: memref<1x32x16xf32, #tpu.memory_space<vmem>>, %arg3: memref<8x32xf32, #tpu.memory_space<vmem>>, %arg4: memref<8x1xf32, #tpu.memory_space<vmem>>, %arg5: memref<1x8x16xf32, #tpu.memory_space<vmem>>, %arg6: memref<1x1x16xf32, #tpu.memory_space<vmem>>) attributes {dimension_semantics = [#tpu.dimension_semantics<parallel>, #tpu.dimension_semantics<parallel>], iteration_bounds = array<i64: 2, 1>, scalar_prefetch = 0 : i64, scratch_operands = 0 : i64, tpu.core_type = #tpu.core_type<tc>, window_params = [{transform_indices = @transform_0, window_bounds = array<i64: 1, 32, 16>}, {pipeline_mode = #tpu.pipeline_mode<synchronous>, transform_indices = @transform_1, window_bounds = array<i64: 8, 32>}, {pipeline_mode = #tpu.pipeline_mode<synchronous>, transform_indices = @transform_2, window_bounds = array<i64: 8, 1>}, {transform_indices = @transform_3, window_bounds = array<i64: 1, 8, 16>}, {transform_indices = @transform_4, window_bounds = array<i64: 1, 1, 16>}]} {
    %c0 = arith.constant 0 : index
    %c0_0 = arith.constant 0 : index
    %0 = vector.load %arg3[%c0, %c0_0] : memref<8x32xf32, #tpu.memory_space<vmem>>, vector<8x32xf32>
    %c0_1 = arith.constant 0 : index
    %c0_2 = arith.constant 0 : index
    %c0_3 = arith.constant 0 : index
    %1 = vector.load %arg2[%c0_1, %c0_2, %c0_3] : memref<1x32x16xf32, #tpu.memory_space<vmem>>, vector<1x32x16xf32>
    %2 = vector.shape_cast %1 : vector<1x32x16xf32> to vector<32x16xf32>
    %cst = arith.constant dense<0.000000e+00> : vector<8x16xf32>
    %3 = tpu.matmul %0, %2, %cst {dimension_numbers = #tpu.dot_dimension_numbers<[1], [0], [0], [1], [0, 0, 1, 1], [], []>} : vector<8x32xf32>, vector<32x16xf32>, vector<8x16xf32> -> vector<8x16xf32>
    %c0_4 = arith.constant 0 : index
    %c0_5 = arith.constant 0 : index
    %4 = vector.load %arg4[%c0_4, %c0_5] : memref<8x1xf32, #tpu.memory_space<vmem>>, vector<8x1xf32>
    %5 = vector.broadcast %4 : vector<8x1xf32> to vector<8x16xf32>
    %6 = arith.addf %3, %5 : vector<8x16xf32>
    %c0_6 = arith.constant 0 : index
    %c0_7 = arith.constant 0 : index
    %c0_8 = arith.constant 0 : index
    %7 = vector.load %arg5[%c0_6, %c0_7, %c0_8] : memref<1x8x16xf32, #tpu.memory_space<vmem>>, vector<1x8x16xf32>
    %8 = vector.shape_cast %7 : vector<1x8x16xf32> to vector<8x16xf32>
    %9 = vector.shape_cast %6 : vector<8x16xf32> to vector<1x8x16xf32>
    tpu.vector_store %arg5[%c0_6, %c0_7, %c0_8], %9 {strides = array<i32>} : memref<1x8x16xf32, #tpu.memory_space<vmem>>, vector<1x8x16xf32>,
    %c0_9 = arith.constant 0 : index
    %c0_10 = arith.constant 0 : index
    %c0_11 = arith.constant 0 : index
    %10 = vector.load %arg5[%c0_9, %c0_10, %c0_11] : memref<1x8x16xf32, #tpu.memory_space<vmem>>, vector<1x8x16xf32>
    %11 = vector.shape_cast %10 : vector<1x8x16xf32> to vector<8x16xf32>
    %cst_12 = arith.constant dense<0xFF800000> : vector<16xf32>
    %12 = vector.multi_reduction <maximumf>, %11, %cst_12 [0] : vector<8x16xf32> to vector<16xf32>
    %13 = vector.shape_cast %12 : vector<16xf32> to vector<1x16xf32>
    %14 = vector.broadcast %13 : vector<1x16xf32> to vector<8x16xf32>
    %15 = arith.subf %11, %14 : vector<8x16xf32>
    %16 = math.exp %15 : vector<8x16xf32>
    %cst_13 = arith.constant dense<0.000000e+00> : vector<16xf32>
    %17 = vector.multi_reduction <add>, %16, %cst_13 [0] : vector<8x16xf32> to vector<16xf32>
    %18 = vector.shape_cast %17 : vector<16xf32> to vector<1x16xf32>
    %c0_14 = arith.constant 0 : index
    %c0_15 = arith.constant 0 : index
    %c0_16 = arith.constant 0 : index
    %19 = vector.load %arg6[%c0_14, %c0_15, %c0_16] : memref<1x1x16xf32, #tpu.memory_space<vmem>>, vector<1x1x16xf32>
    %20 = vector.shape_cast %19 : vector<1x1x16xf32> to vector<1x16xf32>
    %21 = vector.shape_cast %18 : vector<1x16xf32> to vector<1x1x16xf32>
    tpu.vector_store %arg6[%c0_14, %c0_15, %c0_16], %21 {strides = array<i32>} : memref<1x1x16xf32, #tpu.memory_space<vmem>>, vector<1x1x16xf32>,
    return
  }
  func.func @transform_0(%arg0: i32, %arg1: i32) -> (i32, i32, i32) {
    %c0_i32 = arith.constant 0 : i32
    %c0_i32_0 = arith.constant 0 : i32
    return %arg0, %c0_i32, %arg1 : i32, i32, i32
  }
  func.func @transform_1(%arg0: i32, %arg1: i32) -> (i32, i32) {
    %c0_i32 = arith.constant 0 : i32
    %c0_i32_0 = arith.constant 0 : i32
    %c0_i32_1 = arith.constant 0 : i32
    return %c0_i32, %c0_i32_0 : i32, i32
  }
  func.func @transform_2(%arg0: i32, %arg1: i32) -> (i32, i32) {
    %c0_i32 = arith.constant 0 : i32
    %c0_i32_0 = arith.constant 0 : i32
    %c0_i32_1 = arith.constant 0 : i32
    return %c0_i32, %c0_i32_0 : i32, i32
  }
  func.func @transform_3(%arg0: i32, %arg1: i32) -> (i32, i32, i32) {
    %c0_i32 = arith.constant 0 : i32
    %c0_i32_0 = arith.constant 0 : i32
    return %arg0, %c0_i32, %arg1 : i32, i32, i32
  }
  func.func @transform_4(%arg0: i32, %arg1: i32) -> (i32, i32, i32) {
    %c0_i32 = arith.constant 0 : i32
    %c0_i32_0 = arith.constant 0 : i32
    return %arg0, %c0_i32, %arg1 : i32, i32, i32
  }
}

</mosaic_0001>

<llo_original>
// kernel: _forward_layer.1
$region0: #{_forward_layer.1}
  #allocation0 [shape = 'u32[]', space=smem, size = 0x4, offset = 0x4, fixed_abs, tag = 'smem constant byte address 0x4 - core index']
  #allocation1 [shape = 'u32[144,128]{1,0:T(1,128)}', space=vmem, size = 0x12000, scoped, tag = 'internal scratch']
  %s0 = inlined_call_operand.vmem [shape: f32[2,32,16], index: 0, kind: input, shape index: {}]
  %s1 = inlined_call_operand.vmem [shape: f32[8,32], index: 1, kind: input, shape index: {}]
  %s2 = inlined_call_operand.vmem [shape: f32[8,1], index: 2, kind: input, shape index: {}]
  %s3 = inlined_call_operand.vmem [shape: f32[2,8,16], index: 3, kind: output, shape index: {0}]
  %s4 = inlined_call_operand.vmem [shape: f32[2,1,16], index: 4, kind: output, shape index: {1}]
  %5 = xla_tuple %s3, %s4
  %s6 = sld [smem:[#allocation0]]
  $region53: #{_forward_layer.1} parent=0
    _
  %s8 = ssub.s32 1, %s6
  %s9 = scalar_select 0, %s8, %s6
  loop: start=0, step=1, limit=4
  $region2: #{_forward_layer.1} parent=0 // loop_pre_header
    _
  $region3: #{_forward_layer.1} parent=0 // loop_header
    %s11 = sphi 0, %s15
    %p12 = scmp.ge.s32.totalorder %s11, 4
    %s18 = sphi 0, %s30
    %s19 = sphi 0, %s26
    %s20 = sphi 0, %s18
    %s21 = sphi 0, %s19
    %s22 = sphi 0, %s20
    %s23 = sphi 0, %s21
    %s35 = sphi 0, %s37
    %s38 = sphi 0, %s35
    %s39 = sphi 0, %s38
    %s55 = sphi 0, %s39
    %s59 = sphi 0, %s59
    %s61 = sphi 0, %s59
    %s62 = sphi 0, %s61
    %s76 = sphi 0, %s62
    %s80 = sphi 0, %s80
    %s82 = sphi 0, %s80
    %s83 = sphi 0, %s82
    %s97 = sphi 0, %s83
    %s105 = sphi 0, %s107
    %s108 = sphi 0, %s105
    %s109 = sphi 0, %s108
    %s125 = sphi 0, %s109
    %s133 = sphi 0, %s135
    %s136 = sphi 0, %s133
    %s137 = sphi 0, %s136
    %s153 = sphi 0, %s137
  $region4: #{_forward_layer.1} parent=0 // loop_header_branch
    %14 = sbr.rel (%p12) target = $region8
  $region5: #{_forward_layer.1} parent=0 // loop_body
    %s16 = ssub.s32 %s11, 1
    %s17 = ssub.s32 %s11, 2
    %s24 = sadd.s32 1, %s19
    %p25 = scmp.ge.s32.totalorder %s24, 1
    %s26 = scalar_select %p25, 0, %s24
    %s27 = sadd.s32 1, %s18
    %s28 = scalar_select %p25, %s27, %s18
    %p29 = scmp.ge.s32.totalorder %s28, 2
    %s30 = scalar_select %p29, 0, %s28
    %s31 = ssub.s32 %s18, %s30
    %s32 = ssub.s32 %s19, %s26
    %s33 = sor.u32 %s31, %s32
    %p34 = scmp.eq.s32.totalorder %s33, 0
    %s36 = sadd.s32 %s35, 1
    %s37 = scalar_select %p34, %s35, %s36
    %p40 = pneg %p34
    %p41 = scmp.eq.s32.totalorder %s11, 1
    %p42 = por %p40, %p41
    %p43 = scmp.ne.s32.totalorder %s35, %s38
    %p44 = scmp.eq.s32.totalorder %s11, 0
    %p45 = por %p43, %p44
    %p46 = scmp.ne.s32.totalorder %s35, %s38
    %p47 = scmp.eq.s32.totalorder %s16, 1
    %p48 = por %p46, %p47
    %p49 = scmp.ne.s32.totalorder %s38, %s39
    %p50 = scmp.eq.s32.totalorder %s16, 0
    %p51 = por %p49, %p50
    %p52 = scmp.ne.s32.totalorder %s38, %s39
    %p53 = scmp.eq.s32.totalorder %s17, 1
    %p54 = por %p52, %p53
    %p56 = scmp.ne.s32.totalorder %s39, %s55
    %p57 = scmp.eq.s32.totalorder %s17, 0
    %p58 = por %p56, %p57
    %s60 = sadd.s32 %s59, 1
    %p63 = scmp.eq.s32.totalorder %s11, 1
    %p64 = scmp.ne.s32.totalorder %s59, %s61
    %p65 = scmp.eq.s32.totalorder %s11, 0
    %p66 = por %p64, %p65
    %p67 = scmp.ne.s32.totalorder %s59, %s61
    %p68 = scmp.eq.s32.totalorder %s16, 1
    %p69 = por %p67, %p68
    %p70 = scmp.ne.s32.totalorder %s61, %s62
    %p71 = scmp.eq.s32.totalorder %s16, 0
    %p72 = por %p70, %p71
    %p73 = scmp.ne.s32.totalorder %s61, %s62
    %p74 = scmp.eq.s32.totalorder %s17, 1
    %p75 = por %p73, %p74
    %p77 = scmp.ne.s32.totalorder %s62, %s76
    %p78 = scmp.eq.s32.totalorder %s17, 0
    %p79 = por %p77, %p78
    %s81 = sadd.s32 %s80, 1
    %p84 = scmp.eq.s32.totalorder %s11, 1
    %p85 = scmp.ne.s32.totalorder %s80, %s82
    %p86 = scmp.eq.s32.totalorder %s11, 0
    %p87 = por %p85, %p86
    %p88 = scmp.ne.s32.totalorder %s80, %s82
    %p89 = scmp.eq.s32.totalorder %s16, 1
    %p90 = por %p88, %p89
    %p91 = scmp.ne.s32.totalorder %s82, %s83
    %p92 = scmp.eq.s32.totalorder %s16, 0
    %p93 = por %p91, %p92
    %p94 = scmp.ne.s32.totalorder %s82, %s83
    %p95 = scmp.eq.s32.totalorder %s17, 1
    %p96 = por %p94, %p95
    %p98 = scmp.ne.s32.totalorder %s83, %s97
    %p99 = scmp.eq.s32.totalorder %s17, 0
    %p100 = por %p98, %p99
    %s101 = ssub.s32 %s18, %s30
    %s102 = ssub.s32 %s19, %s26
    %s103 = sor.u32 %s101, %s102
    %p104 = scmp.eq.s32.totalorder %s103, 0
    %s106 = sadd.s32 %s105, 1
    %s107 = scalar_select %p104, %s105, %s106
    %p110 = pneg %p104
    %p111 = scmp.eq.s32.totalorder %s11, 1
    %p112 = por %p110, %p111
    %p113 = scmp.ne.s32.totalorder %s105, %s108
    %p114 = scmp.eq.s32.totalorder %s11, 0
    %p115 = por %p113, %p114
    %p116 = scmp.ne.s32.totalorder %s105, %s108
    %p117 = scmp.eq.s32.totalorder %s16, 1
    %p118 = por %p116, %p117
    %p119 = scmp.ne.s32.totalorder %s108, %s109
    %p120 = scmp.eq.s32.totalorder %s16, 0
    %p121 = por %p119, %p120
    %p122 = scmp.ne.s32.totalorder %s108, %s109
    %p123 = scmp.eq.s32.totalorder %s17, 1
    %p124 = por %p122, %p123
    %p126 = scmp.ne.s32.totalorder %s109, %s125
    %p127 = scmp.eq.s32.totalorder %s17, 0
    %p128 = por %p126, %p127
    %s129 = ssub.s32 %s18, %s30
    %s130 = ssub.s32 %s19, %s26
    %s131 = sor.u32 %s129, %s130
    %p132 = scmp.eq.s32.totalorder %s131, 0
    %s134 = sadd.s32 %s133, 1
    %s135 = scalar_select %p132, %s133, %s134
    %p138 = pneg %p132
    %p139 = scmp.eq.s32.totalorder %s11, 1
    %p140 = por %p138, %p139
    %p141 = scmp.ne.s32.totalorder %s133, %s136
    %p142 = scmp.eq.s32.totalorder %s11, 0
    %p143 = por %p141, %p142
    %p144 = scmp.ne.s32.totalorder %s133, %s136
    %p145 = scmp.eq.s32.totalorder %s16, 1
    %p146 = por %p144, %p145
    %p147 = scmp.ne.s32.totalorder %s136, %s137
    %p148 = scmp.eq.s32.totalorder %s16, 0
    %p149 = por %p147, %p148
    %p150 = scmp.ne.s32.totalorder %s136, %s137
    %p151 = scmp.eq.s32.totalorder %s17, 1
    %p152 = por %p150, %p151
    %p154 = scmp.ne.s32.totalorder %s137, %s153
    %p155 = scmp.eq.s32.totalorder %s17, 0
    %p156 = por %p154, %p155
    %p157 = scmp.le.s32.totalorder 1, %s11
    %p158 = scmp.lt.s32.totalorder %s11, 3
    %p159 = pnand %p157, %p158
    %p160 = pneg %p159
    // Predicated region
    $region9: #{_forward_layer.1} parent=5 // pred_check
      _
    $region10: #{_forward_layer.1} parent=5 // pred_check_branch
      %162 = sbr.rel (%p159) target = $region12
    $region11: #{_forward_layer.1} parent=5 // pred_region
      %s163 = ssub.s32 %s11, 1
      // Predicated region
      $region13: #{_forward_layer.1} parent=11 // pred_check
        %p164 = pneg %p72
      $region14: #{_forward_layer.1} parent=11 // pred_check_branch
        %166 = sbr.rel (%p164) target = $region16
      $region15: #{_forward_layer.1} parent=11 // pred_region
        _
      $region16: #{_forward_layer.1} parent=11 // pred_fallthru
        _
      // Predicated region
      $region17: #{_forward_layer.1} parent=11 // pred_check
        %p167 = pneg %p93
      $region18: #{_forward_layer.1} parent=11 // pred_check_branch
        %169 = sbr.rel (%p167) target = $region20
      $region19: #{_forward_layer.1} parent=11 // pred_region
        _
      $region20: #{_forward_layer.1} parent=11 // pred_fallthru
        _
    $region12: #{_forward_layer.1} parent=5 // pred_fallthru
      _
    %p170 = scmp.lt.s32.totalorder %s11, 2
    // Predicated region
    $region21: #{_forward_layer.1} parent=5 // pred_check
      %p171 = pneg %p170
    $region22: #{_forward_layer.1} parent=5 // pred_check_branch
      %173 = sbr.rel (%p171) target = $region24
    $region23: #{_forward_layer.1} parent=5 // pred_region
      // Predicated region
      $region25: #{_forward_layer.1} parent=23 // pred_check
        %p174 = pneg %p45
      $region26: #{_forward_layer.1} parent=23 // pred_check_branch
        %176 = sbr.rel (%p174) target = $region28
      $region27: #{_forward_layer.1} parent=23 // pred_region
        %p177 = scmp.lt.s32.totalorder %s18, 1
        %s178 = scalar_select %p177, %s18, 1
        %p179 = scmp.lt.s32.totalorder %s19, 0
        %s180 = scalar_select %p179, %s19, 0
        %s181 = smul.addr %s178, 4
        %s182 = sadd.s32 %s180, %s181
        %s183 = smul.addr %s182, 8
        %s184 = scalar_lea.vmem %s0, %s183
      $region28: #{_forward_layer.1} parent=23 // pred_fallthru
        _
    $region24: #{_forward_layer.1} parent=5 // pred_fallthru
      _
    %p185 = scmp.le.s32.totalorder 1, %s11
    %p186 = scmp.lt.s32.totalorder %s11, 3
    %p187 = pnand %p185, %p186
    %p188 = pneg %p187
    // Predicated region
    $region29: #{_forward_layer.1} parent=5 // pred_check
      _
    $region30: #{_forward_layer.1} parent=5 // pred_check_branch
      %190 = sbr.rel (%p187) target = $region32
    $region31: #{_forward_layer.1} parent=5 // pred_region
      %s191 = ssub.s32 %s11, 1
      %p192 = scmp.lt.s32.totalorder %s20, 1
      %s193 = scalar_select %p192, %s20, 1
      %p194 = scmp.lt.s32.totalorder %s21, 0
      %s195 = scalar_select %p194, %s21, 0
      %s196 = smul.addr %s193, 4
      %s197 = sadd.s32 %s195, %s196
      %s198 = smul.addr %s197, 8
      %s199 = scalar_lea.vmem %s0, %s198
      %p200 = pneg %p51
      %p201 = pneg %p48
      %p202 = pneg %p72
      %p203 = pneg %p69
      %p204 = pneg %p93
      %p205 = pneg %p90
      %p206 = pneg %p121
      %p207 = pneg %p118
      %p208 = scmp.lt.s32.totalorder %s20, 1
      %s209 = scalar_select %p208, %s20, 1
      %p210 = scmp.lt.s32.totalorder %s21, 0
      %s211 = scalar_select %p210, %s21, 0
      %s212 = sadd.s32 %s211, %s209
      %s213 = smul.addr %s212, 8
      %s214 = scalar_lea.vmem %s3, %s213
      %p215 = pneg %p149
      %p216 = pneg %p146
      %p217 = scmp.lt.s32.totalorder %s20, 1
      %s218 = scalar_select %p217, %s20, 1
      %p219 = scmp.lt.s32.totalorder %s21, 0
      %s220 = scalar_select %p219, %s21, 0
      %s221 = sadd.s32 %s220, %s218
      %s222 = scalar_lea.vmem %s4, %s221
      %p223 = scmp.lt.s32.totalorder %s20, 1
      %s224 = scalar_select %p223, %s20, 1
      %p225 = scmp.lt.s32.totalorder %s21, 0
      %s226 = scalar_select %p225, %s21, 0
      %s227 = smul.addr %s224, 4
      %s228 = sadd.s32 %s226, %s227
      %s229 = smul.addr %s228, 8
      %s230 = scalar_lea.vmem %s0, %s229
      %p231 = scmp.lt.s32.totalorder %s20, 1
      %s232 = scalar_select %p231, %s20, 1
      %p233 = scmp.lt.s32.totalorder %s21, 0
      %s234 = scalar_select %p233, %s21, 0
      %s235 = sadd.s32 %s234, %s232
      %s236 = smul.addr %s235, 8
      %s237 = scalar_lea.vmem %s3, %s236
      %p238 = scmp.lt.s32.totalorder %s20, 1
      %s239 = scalar_select %p238, %s20, 1
      %p240 = scmp.lt.s32.totalorder %s21, 0
      %s241 = scalar_select %p240, %s21, 0
      %s242 = sadd.s32 %s241, %s239
      %s243 = scalar_lea.vmem %s4, %s242
      %v244 = vld [vmem:[%s1] sm:$0xff]
      %v245 = vld [vmem:[%s230] sm:$0xff]
      %v246 = vld [vmem:[%s230 + $0x8] sm:$0xff]
      %v247 = vld [vmem:[%s230 + $0x10] sm:$0xff]
      %v248 = vld [vmem:[%s230 + $0x18] sm:$0xff]
      %v249 = vld [vmem:[%s2] sm:$0xff]
      %251 = vset.pattern.permute.xlu0 0
      %252 = vperm.xlu0 %251, %v249
      %v253 = vpop.permute.xlu0 %252
      %vm255 = vcmask 261120
      %v257 = vsel %vm255, %v244, 0
      %259 = vmatprep.subr.mxu0 0.0
      %260 = vmatpush1.msra.mxu0 0.0
      %261 = vmatprep.subr.mxu0 0.0
      %262 = vmatpush1.msra.mxu0 0.0
      %263 = vmatprep.subr.mxu0 0.0
      %264 = vmatpush1.msra.mxu0 0.0
      %265 = vmatprep.subr.mxu0 0.0
      %266 = vmatpush1.msra.mxu0 0.0
      %267 = vmatprep.subr.mxu0 0.0
      %268 = vmatpush1.msra.mxu0 0.0
      %269 = vmatprep.subr.mxu0 0.0
      %270 = vmatpush1.msra.mxu0 0.0
      %271 = vmatprep.subr.mxu0 0.0
      %272 = vmatpush1.msra.mxu0 0.0
      %273 = vmatprep.subr.mxu0 0.0
      %274 = vmatpush1.msra.mxu0 0.0
      %275 = vmatprep.subr.mxu0 0.0
      %276 = vmatpush1.msra.mxu0 0.0
      %277 = vmatprep.subr.mxu0 0.0
      %278 = vmatpush1.msra.mxu0 0.0
      %279 = vmatprep.subr.mxu0 0.0
      %280 = vmatpush1.msra.mxu0 0.0
      %281 = vmatprep.subr.mxu0 0.0
      %282 = vmatpush1.msra.mxu0 0.0
      %283 = vmatprep.subr.mxu0 0.0
      %284 = vmatpush1.msra.mxu0 %v248
      %285 = vmatprep.subr.mxu0 0.0
      %286 = vmatpush1.msra.mxu0 %v247
      %287 = vmatprep.subr.mxu0 0.0
      %288 = vmatpush1.msra.mxu0 %v246
      %289 = vmatprep.subr.mxu0 0.0
      %290 = vmatpush1.msra.mxu0 %v245
      %291 = vmatprep.subr.mxu0 0.0
      %292 = vmatpush2.msra.mxu0 0.0
      %293 = vmatprep.subr.mxu0 0.0
      %294 = vmatpush2.msra.mxu0 0.0
      %295 = vmatprep.subr.mxu0 0.0
      %296 = vmatpush2.msra.mxu0 0.0
      %297 = vmatprep.subr.mxu0 0.0
      %298 = vmatpush2.msra.mxu0 0.0
      %299 = vmatprep.subr.mxu0 0.0
      %300 = vmatpush2.msra.mxu0 0.0
      %301 = vmatprep.subr.mxu0 0.0
      %302 = vmatpush2.msra.mxu0 0.0
      %303 = vmatprep.subr.mxu0 0.0
      %304 = vmatpush2.msra.mxu0 0.0
      %305 = vmatprep.subr.mxu0 0.0
      %306 = vmatpush2.msra.mxu0 0.0
      %307 = vmatprep.subr.mxu0 0.0
      %308 = vmatpush2.msra.mxu0 0.0
      %309 = vmatprep.subr.mxu0 0.0
      %310 = vmatpush2.msra.mxu0 0.0
      %311 = vmatprep.subr.mxu0 0.0
      %312 = vmatpush2.msra.mxu0 0.0
      %313 = vmatprep.subr.mxu0 0.0
      %314 = vmatpush2.msra.mxu0 0.0
      %315 = vmatprep.subr.mxu0 0.0
      %316 = vmatpush2.msra.mxu0 0.0
      %317 = vmatprep.subr.mxu0 0.0
      %318 = vmatpush2.msra.mxu0 0.0
      %319 = vmatprep.subr.mxu0 0.0
      %320 = vmatpush2.msra.mxu0 0.0
      %321 = vmatprep.subr.mxu0 0.0
      %322 = vmatpush2.msra.mxu0 0.0
      %323 = vmatprep.mubr.f32.mxu0 0.0
      %324 = vmatmul.mubr.f32.gmra.mxu0 %v257
      %v325 = vpop.f32.mrf.mxu0
      %v326 = vadd.f32 %v253, %v325
      %v327 = vpop.f32.mrf.mxu0
      %328 = vdwg.mxu0
      %vm329 = vcmask 130048
      %330 = vst.msk [vmem:[%s237] sm:$0xff] %vm329, %v326
      %v331 = vld [vmem:[%s237] sm:$0xff]
      %v332 = vsel %vm329, %v331, -inf
      %v333 = vrot.slane %v332, 4
      %v334 = vmax.f32 %v332, %v333
      %v335 = vrot.slane %v334, 2
      %v336 = vmax.f32 %v334, %v335
      %v337 = vrot.slane %v336, 1
      %v338 = vmax.f32 %v336, %v337
      %v339 = vsub.f32 %v331, %v338
      %v340 = vmul.f32 %v339, 1.442695
      %v341 = vpow.pop %v340
      %v342 = vsel %vm329, %v341, 0.0
      %v343 = vrot.slane %v342, 4
      %v344 = vadd.f32 %v342, %v343
      %v345 = vrot.slane %v344, 2
      %v346 = vadd.f32 %v344, %v345
      %v347 = vrot.slane %v346, 1
      %v348 = vadd.f32 %v346, %v347
      %vm349 = vcmask 122880
      %350 = vst.msk [vmem:[%s243] sm:$0x1] %vm349, %v348
      %p351 = scmp.lt.s32.totalorder %s20, 1
      %s352 = scalar_select %p351, %s20, 1
      %p353 = scmp.lt.s32.totalorder %s21, 0
      %s354 = scalar_select %p353, %s21, 0
      %s355 = sadd.s32 %s354, %s352
      %s356 = smul.addr %s355, 8
      %s357 = scalar_lea.vmem %s3, %s356
      %p358 = scmp.lt.s32.totalorder %s20, 1
      %s359 = scalar_select %p358, %s20, 1
      %p360 = scmp.lt.s32.totalorder %s21, 0
      %s361 = scalar_select %p360, %s21, 0
      %s362 = sadd.s32 %s361, %s359
      %s363 = scalar_lea.vmem %s4, %s362
      // Predicated region
      $region33: #{_forward_layer.1} parent=31 // pred_check
        %p364 = pneg %p118
      $region34: #{_forward_layer.1} parent=31 // pred_check_branch
        %366 = sbr.rel (%p364) target = $region36
      $region35: #{_forward_layer.1} parent=31 // pred_region
        _
      $region36: #{_forward_layer.1} parent=31 // pred_fallthru
        _
      // Predicated region
      $region37: #{_forward_layer.1} parent=31 // pred_check
        %p367 = pneg %p146
      $region38: #{_forward_layer.1} parent=31 // pred_check_branch
        %369 = sbr.rel (%p367) target = $region40
      $region39: #{_forward_layer.1} parent=31 // pred_region
        _
      $region40: #{_forward_layer.1} parent=31 // pred_fallthru
        _
    $region32: #{_forward_layer.1} parent=5 // pred_fallthru
      _
    %p370 = scmp.le.s32.totalorder 2, %s11
    // Predicated region
    $region41: #{_forward_layer.1} parent=5 // pred_check
      %p371 = pneg %p370
    $region42: #{_forward_layer.1} parent=5 // pred_check_branch
      %373 = sbr.rel (%p371) target = $region44
    $region43: #{_forward_layer.1} parent=5 // pred_region
      %s374 = ssub.s32 %s11, 2
      // Predicated region
      $region45: #{_forward_layer.1} parent=43 // pred_check
        %p375 = pneg %p124
      $region46: #{_forward_layer.1} parent=43 // pred_check_branch
        %377 = sbr.rel (%p375) target = $region48
      $region47: #{_forward_layer.1} parent=43 // pred_region
        %p378 = scmp.lt.s32.totalorder %s22, 1
        %s379 = scalar_select %p378, %s22, 1
        %p380 = scmp.lt.s32.totalorder %s23, 0
        %s381 = scalar_select %p380, %s23, 0
        %s382 = sadd.s32 %s381, %s379
        %s383 = smul.addr %s382, 8
        %s384 = scalar_lea.vmem %s3, %s383
      $region48: #{_forward_layer.1} parent=43 // pred_fallthru
        _
      // Predicated region
      $region49: #{_forward_layer.1} parent=43 // pred_check
        %p385 = pneg %p152
      $region50: #{_forward_layer.1} parent=43 // pred_check_branch
        %387 = sbr.rel (%p385) target = $region52
      $region51: #{_forward_layer.1} parent=43 // pred_region
        %p388 = scmp.lt.s32.totalorder %s22, 1
        %s389 = scalar_select %p388, %s22, 1
        %p390 = scmp.lt.s32.totalorder %s23, 0
        %s391 = scalar_select %p390, %s23, 0
        %s392 = sadd.s32 %s391, %s389
        %s393 = scalar_lea.vmem %s4, %s392
      $region52: #{_forward_layer.1} parent=43 // pred_fallthru
        _
    $region44: #{_forward_layer.1} parent=5 // pred_fallthru
      _
  $region6: #{_forward_layer.1} parent=0 // loop_footer
    %s15 = sadd.s32 1, %s11
  $region7: #{_forward_layer.1} parent=0 // loop_footer_branch
    %10 = sbr.rel target = $region3
  $region8: #{_forward_layer.1} parent=0 // loop_exit
    _

</llo_original>
